<compile_context>
chip_gen: v5e
topology: v5e:2x2
jax: 0.10.0
libtpu: 0.0.40
codegen_flags: <defaults>
</compile_context>

<pallas_src>
import jax
import jax.numpy as jnp
from jax.experimental import pallas as pl
from jax.experimental.pallas import tpu as pltpu


def _model_kernel(x_ref, w_ref, b_ref, o_ref):
    """x_ref: (TB, N0), w_ref: (4, N0), b_ref: (4, 1), o_ref: (4, TB)."""
    x = x_ref[...]
    w = w_ref[...]
    b = b_ref[...]

    # Linear, emitted transposed: (4, N0) x (TB, N0)^T -> (4, TB).
    # Contracting dim 1 of both operands keeps the MXU fed without any
    # wrapper-side transpose, and the (4, TB) layout keeps the epilogue and
    # the stores lane-dense.
    y = jax.lax.dot_general(
        w, x,
        dimension_numbers=(((1,), (1,)), ((), ())),
        preferred_element_type=jnp.float32,
    ) + b  # (4, 1) broadcasts along lanes.

    y = jnp.tanh(y)  # EUP

    # F.normalize(p=2, dim=1, eps=1e-12): one norm per input row == per
    # output column here.  y * rsqrt(max(sum(y^2), eps^2)) is equivalent to
    # y / max(||y||, 1e-12) (sqrt is monotone).
    sumsq = jnp.sum(y * y, axis=0, keepdims=True)      # (1, TB), sublane reduce
    inv = jax.lax.rsqrt(jnp.maximum(sumsq, 1e-24))     # EUP
    o_ref[...] = (y * inv).astype(o_ref.dtype)


def model_1layer_forward(x, weight, bias, *,
                         nogrid_max_bytes=8 << 20,
                         target_tile_bytes=8 << 20):
    """x: (B, N0) f32; weight: (4, N0) f32; bias: (4,) f32 -> (B, 4) f32."""
    B, N0 = x.shape
    b2d = bias.reshape(4, 1)   # metadata-only reshape, keeps the operand 2-D

    cost = pl.CostEstimate(
        flops=8 * B * N0 + 10 * B,
        transcendentals=5 * B,                       # 4x tanh + 1x rsqrt per row
        bytes_accessed=4 * (B * N0 + 4 * N0 + 4 + 4 * B),
    )

    x_bytes = B * N0 * 4
    if x_bytes <= nogrid_max_bytes:
        # Small problem: single grid-less invocation with everything resident
        # in VMEM — no pipeline prologue/epilogue, no double buffering.
        out_t = pl.pallas_call(
            _model_kernel,
            out_shape=jax.ShapeDtypeStruct((4, B), jnp.float32),
            in_specs=[
                pl.BlockSpec(memory_space=pltpu.MemorySpace.VMEM),
                pl.BlockSpec(memory_space=pltpu.MemorySpace.VMEM),
                pl.BlockSpec(memory_space=pltpu.MemorySpace.VMEM),
            ],
            out_specs=pl.BlockSpec(memory_space=pltpu.MemorySpace.VMEM),
            compiler_params=pltpu.CompilerParams(vmem_limit_bytes=32 << 20),
            cost_estimate=cost,
        )(x, weight, b2d)
        return out_t.T                               # (B, 4); B*16 bytes, trivial

    # Large batch: tile the batch axis.  Tile size is byte-targeted from N0
    # (~target_tile_bytes of x per step, rounded to a multiple of 128 rows so
    # the (4, tb) output blocks stay lane-dense).  No jnp.pad of x: the grid
    # is a cdiv grid; the partial last block is masked by Pallas.
    row_bytes = N0 * 4
    tb = max(128, (target_tile_bytes // row_bytes) // 128 * 128)
    tb = min(tb, pl.cdiv(B, 128) * 128)
    num_tiles = pl.cdiv(B, tb)
    # TODO(synk): for extremely wide N0 (128 rows * N0 * 4B >> VMEM) this
    # would need a K-tiled reduction grid; not implemented here.

    vmem_limit = min(
        48 << 20,                                    # safe on v7x's 64 MiB VMEM
        max(16 << 20,
            2 * tb * row_bytes                       # double-buffered x tiles
            + 2 * 16 * tb                            # double-buffered (4, tb) out tiles
            + 2 * 16 * N0                            # resident weight (+ slack)
            + (2 << 20)),                            # compiler-scratch headroom
    )

    out_t = pl.pallas_call(
        _model_kernel,
        out_shape=jax.ShapeDtypeStruct((4, B), jnp.float32),
        grid=(num_tiles,),
        in_specs=[
            pl.BlockSpec((tb, N0), lambda i: (i, 0)),
            pl.BlockSpec((4, N0), lambda i: (0, 0)),   # resident
            pl.BlockSpec((4, 1), lambda i: (0, 0)),    # resident
        ],
        out_specs=pl.BlockSpec((4, tb), lambda i: (0, i)),
        compiler_params=pltpu.CompilerParams(
            dimension_semantics=("parallel",),         # rows independent
            vmem_limit_bytes=vmem_limit,
        ),
        cost_estimate=cost,
    )(x, weight, b2d)
    return out_t.T


if __name__ == "__main__":
    def ref_forward(x, w, b):
        y = jnp.tanh(x @ w.T + b)
        nrm = jnp.maximum(jnp.linalg.norm(y, axis=1, keepdims=True), 1e-12)
        return y / nrm

    def make_inputs(key, B, N0):
        kx, kw, kb = jax.random.split(key, 3)
        bound = 1.0 / (N0 ** 0.5)
        w = jax.random.uniform(kw, (4, N0), jnp.float32, -bound, bound)
        b = jax.random.uniform(kb, (4,), jnp.float32, -bound, bound)
        x = jax.random.normal(kx, (B, N0), jnp.float32)
        return x, w, b

    # 1) Spec-sized small shapes: B=8, N0=32 -> grid-less VMEM-resident path.
    x, w, b = make_inputs(jax.random.PRNGKey(0), 8, 32)
    out = jax.block_until_ready(model_1layer_forward(x, w, b))
    assert out.shape == (8, 4)
    assert jnp.allclose(out, ref_forward(x, w, b), atol=1e-5, rtol=1e-5)

    # 2) Tiled path with a non-divisible batch (exercises the pad-free cdiv
    #    grid and the lane-dense (4, tb) output blocks).
    x2, w2, b2 = make_inputs(jax.random.PRNGKey(1), 333, 256)
    out2 = jax.block_until_ready(
        model_1layer_forward(x2, w2, b2,
                             nogrid_max_bytes=0,
                             target_tile_bytes=128 * 256 * 4))
    assert out2.shape == (333, 4)
    assert jnp.allclose(out2, ref_forward(x2, w2, b2), atol=1e-4, rtol=1e-4)

    print("KERNEL_OK")
</pallas_src>

<mosaic_0001>
module attributes {stable_mosaic.version = 11 : i64} {
  func.func @_model_kernel(%arg0: memref<8x32xf32, #tpu.memory_space<vmem>>, %arg1: memref<4x32xf32, #tpu.memory_space<vmem>>, %arg2: memref<4x1xf32, #tpu.memory_space<vmem>>, %arg3: memref<4x8xf32, #tpu.memory_space<vmem>>) attributes {dimension_semantics = [], scalar_prefetch = 0 : i64, scratch_operands = 0 : i64, tpu.core_type = #tpu.core_type<tc>} {
    %c0 = arith.constant 0 : index
    %c0_0 = arith.constant 0 : index
    %0 = vector.load %arg0[%c0, %c0_0] : memref<8x32xf32, #tpu.memory_space<vmem>>, vector<8x32xf32>
    %c0_1 = arith.constant 0 : index
    %c0_2 = arith.constant 0 : index
    %1 = vector.load %arg1[%c0_1, %c0_2] : memref<4x32xf32, #tpu.memory_space<vmem>>, vector<4x32xf32>
    %c0_3 = arith.constant 0 : index
    %c0_4 = arith.constant 0 : index
    %2 = vector.load %arg2[%c0_3, %c0_4] : memref<4x1xf32, #tpu.memory_space<vmem>>, vector<4x1xf32>
    %cst = arith.constant dense<0.000000e+00> : vector<4x8xf32>
    %3 = tpu.matmul %1, %0, %cst {dimension_numbers = #tpu.dot_dimension_numbers<[1], [1], [0], [0], [0, 0, 1, 0], [], []>} : vector<4x32xf32>, vector<8x32xf32>, vector<4x8xf32> -> vector<4x8xf32>
    %4 = vector.broadcast %2 : vector<4x1xf32> to vector<4x8xf32>
    %5 = arith.addf %3, %4 : vector<4x8xf32>
    %6 = math.tanh %5 : vector<4x8xf32>
    %7 = arith.mulf %6, %6 : vector<4x8xf32>
    %cst_5 = arith.constant dense<0.000000e+00> : vector<8xf32>
    %8 = vector.multi_reduction <add>, %7, %cst_5 [0] : vector<4x8xf32> to vector<8xf32>
    %9 = vector.shape_cast %8 : vector<8xf32> to vector<1x8xf32>
    %cst_6 = arith.constant 1.000000e-24 : f32
    %10 = vector.broadcast %cst_6 : f32 to vector<1x8xf32>
    %11 = arith.maximumf %9, %10 : vector<1x8xf32>
    %12 = math.rsqrt %11 : vector<1x8xf32>
    %13 = vector.broadcast %12 : vector<1x8xf32> to vector<4x8xf32>
    %14 = arith.mulf %6, %13 : vector<4x8xf32>
    %c0_7 = arith.constant 0 : index
    %c0_8 = arith.constant 0 : index
    %15 = vector.load %arg3[%c0_7, %c0_8] : memref<4x8xf32, #tpu.memory_space<vmem>>, vector<4x8xf32>
    tpu.vector_store %arg3[%c0_7, %c0_8], %14 {strides = array<i32>} : memref<4x8xf32, #tpu.memory_space<vmem>>, vector<4x8xf32>,
    return
  }
}

</mosaic_0001>

<llo_original>
// kernel: tpu_custom_call.1
$region0: #{tpu_custom_call.1}
  #allocation0 [shape = 'u32[]', space=smem, size = 0x4, offset = 0x4, fixed_abs, tag = 'smem constant byte address 0x4 - core index']
  #allocation1 [shape = 'u32[72,128]{1,0:T(1,128)}', space=vmem, size = 0x9000, scoped, tag = 'internal scratch']
  %s0 = inlined_call_operand.hbm [shape: f32[8,32], index: 0, kind: input, shape index: {}]
  %s1 = inlined_call_operand.vmem [shape: f32[4,32], index: 1, kind: input, shape index: {}]
  %s2 = inlined_call_operand.vmem [shape: f32[4,1], index: 2, kind: input, shape index: {}]
  %s3 = inlined_call_operand.hbm [shape: f32[4,8], index: 3, kind: output, shape index: {}]
  %s4 = sld [smem:[#allocation0]]
  $region26: #{tpu_custom_call.1} parent=0
    _
  %s6 = ssub.s32 1, %s4
  %s7 = scalar_select 0, %s6, %s4
  $region1: #{tpu_custom_call.1} parent=0
    #allocation2 [shape = 'u8[4096]{0}', space=vmem, size = 0x1000, scoped, tag = 'input window, operand 0, single buffered']
    #allocation3 [shape = 's32[1]{0}', space=sflag, size = 0x4, scoped, tag = 'scoped memory for tpu_custom_call.1']
    #allocation4 [shape = 's32[1]{0}', space=sflag, size = 0x4, scoped, tag = 'scoped memory for tpu_custom_call.1']
    #allocation5 [shape = 'u8[2048]{0}', space=vmem, size = 0x800, scoped, tag = 'output window, operand 0, single buffered']
    %8 = vsyncpa [#allocation3], 0
    %9 = vsyncpa [#allocation4], 0
    // Predicated region
    $region2: #{tpu_custom_call.1} parent=1 // pred_check
      _
    $region3: #{tpu_custom_call.1} parent=1 // pred_check_branch
      %11 = sbr.rel (0) target = $region5
    $region4: #{tpu_custom_call.1} parent=1 // pred_region
      %13 = vsyncadd [#allocation3], 0
      %s15 = sshll.u32 %s0, 4
      %s16 = int_to_ptr.hbm [resolvable:$true] %s15
      %s17 = sshll.u32 [#allocation2], 4
      %s18 = int_to_ptr.vmem [resolvable:$true] %s17
      %20 = dma.hbm_to_vmem [thread:$0]  %s16, 128, %s18, [#allocation3]
    $region5: #{tpu_custom_call.1} parent=1 // pred_fallthru
      _
    // Predicated region
    $region6: #{tpu_custom_call.1} parent=1 // pred_check
      _
    $region7: #{tpu_custom_call.1} parent=1 // pred_check_branch
      %22 = sbr.rel (0) target = $region9
    $region8: #{tpu_custom_call.1} parent=1 // pred_region
      _
    $region9: #{tpu_custom_call.1} parent=1 // pred_fallthru
      _
    // Predicated region
    $region10: #{tpu_custom_call.1} parent=1 // pred_check
      _
    $region11: #{tpu_custom_call.1} parent=1 // pred_check_branch
      %24 = sbr.rel (0) target = $region13
    $region12: #{tpu_custom_call.1} parent=1 // pred_region
      _
    $region13: #{tpu_custom_call.1} parent=1 // pred_fallthru
      _
    // Predicated region
    $region14: #{tpu_custom_call.1} parent=1 // pred_check
      _
    $region15: #{tpu_custom_call.1} parent=1 // pred_check_branch
      %26 = sbr.rel (0) target = $region17
    $region16: #{tpu_custom_call.1} parent=1 // pred_region
      %28 = dma.done [#allocation3], 128
    $region17: #{tpu_custom_call.1} parent=1 // pred_fallthru
      _
    %v29 = vld [vmem:[#allocation2] sm:$0xff]
    %v30 = vld [vmem:[%s1] sm:$0xf]
    %v31 = vld [vmem:[%s2] sm:$0xf]
    %33 = vset.pattern.permute.xlu0 0
    %34 = vperm.xlu0 %33, %v31
    %v35 = vpop.permute.xlu0 %34
    %vm37 = vcmask 261120
    %v39 = vsel %vm37, %v30, 0
    %v42 = vsel %vm37, %v29, 0
    %44 = vmatpush.xpose.msra.mxu0 0.0
    %45 = vmatpush.xpose.msra.mxu0 0.0
    %46 = vmatpush.xpose.msra.mxu0 0.0
    %47 = vmatpush.xpose.msra.mxu0 0.0
    %48 = vmatpush.xpose.msra.mxu0 0.0
    %49 = vmatpush.xpose.msra.mxu0 0.0
    %50 = vmatpush.xpose.msra.mxu0 0.0
    %51 = vmatpush.xpose.msra.mxu0 0.0
    %52 = vmatpush.xpose.msra.mxu0 0.0
    %53 = vmatpush.xpose.msra.mxu0 0.0
    %54 = vmatpush.xpose.msra.mxu0 0.0
    %55 = vmatpush.xpose.msra.mxu0 0.0
    %56 = vmatpush.xpose.msra.mxu0 0.0
    %57 = vmatpush.xpose.msra.mxu0 0.0
    %58 = vmatpush.xpose.msra.mxu0 0.0
    %59 = vmatpush.xpose.msra.mxu0 %v42
    %60 = vmatmul.f32.gmra.mxu0 %v39
    %v61 = vpop.f32.mrf.mxu0
    %v62 = vadd.f32 %v35, %v61
    %63 = vdwg.mxu0
    %v64 = vtanh.pop %v62
    %v65 = vmul.f32 %v64, %v64
    %vm66 = vcmask 60416
    %v67 = vsel %vm66, %v65, 0.0
    %v68 = vrot.slane %v67, 4
    %v69 = vadd.f32 %v67, %v68
    %v70 = vrot.slane %v69, 2
    %v71 = vadd.f32 %v69, %v70
    %v72 = vrot.slane %v71, 1
    %v73 = vadd.f32 %v71, %v72
    %v74 = vmax.f32 %v73, 1e-24
    %v75 = vrsqrt.pop %v74
    %v76 = vmul.f32 %v75, %v74
    %v77 = vmul.f32 %v76, %v75
    %v78 = vmul.f32 0.5, %v77
    %v79 = vsub.f32 1.5, %v78
    %v80 = vmul.f32 %v75, %v79
    %vm81 = vweird.f32 %v74
    %vm82 = vweird.f32 %v75
    %vm83 = vmor %vm81, %vm82
    %v84 = vsel %vm83, %v75, %v80
    %v85 = vmul.f32 %v64, %v84
    %86 = vst.msk [vmem:[#allocation5] sm:$0xf] %vm66, %v85
    // Predicated region
    $region18: #{tpu_custom_call.1} parent=1 // pred_check
      _
    $region19: #{tpu_custom_call.1} parent=1 // pred_check_branch
      %88 = sbr.rel (0) target = $region21
    $region20: #{tpu_custom_call.1} parent=1 // pred_region
      %90 = vsyncadd [#allocation4], 0
      %s92 = sshll.u32 [#allocation5], 4
      %s93 = int_to_ptr.vmem [resolvable:$true] %s92
      %s94 = sshll.u32 %s3, 4
      %s95 = int_to_ptr.hbm [resolvable:$true] %s94
      %97 = dma.vmem_to_hbm [thread:$0]  %s93, 64, %s95, [#allocation4]
    $region21: #{tpu_custom_call.1} parent=1 // pred_fallthru
      _
    // Predicated region
    $region22: #{tpu_custom_call.1} parent=1 // pred_check
      _
    $region23: #{tpu_custom_call.1} parent=1 // pred_check_branch
      %99 = sbr.rel (0) target = $region25
    $region24: #{tpu_custom_call.1} parent=1 // pred_region
      %101 = dma.done [#allocation4], 64
    $region25: #{tpu_custom_call.1} parent=1 // pred_fallthru
      _
    %102 = vsyncpa [#allocation3], 1
    %103 = vsyncpa [#allocation4], 1

</llo_original>
